<compile_context>
chip_gen: v7x
topology: tpu7x:2x2x1
jax: 0.10.0
libtpu: 0.0.40
codegen_flags: <defaults>
</compile_context>

<pallas_src>
import math

import jax
import jax.numpy as jnp
from jax.experimental import pallas as pl
from jax.experimental.pallas import tpu as pltpu


def _round_up(n, m):
    return ((n + m - 1) // m) * m


def value_kernel(xT_ref, w1_ref, b1_ref, w2_ref, b2_ref, wv_ref, bv_ref, out_ref):
    # All activations keep the batch on the LANE axis: xT (S, TB), h (H, TB).
    # Layer 1: bf16 MXU matmul (LHS M = H, small), f32 accumulate,
    # f32 bias-add + tanh (VPU/EUP f32 path -> valid on v5e too).
    xT = xT_ref[...].astype(jnp.bfloat16)                                   # (S, TB)
    h = jnp.dot(w1_ref[...], xT, preferred_element_type=jnp.float32)        # (H, TB)
    h = jnp.tanh(h + b1_ref[...])

    # Layer 2: same pattern.
    h = jnp.dot(w2_ref[...], h.astype(jnp.bfloat16),
                preferred_element_type=jnp.float32)                         # (H, TB)
    h = jnp.tanh(h + b2_ref[...])

    # Value head: an N=1 MXU matmul is worst-case MXU utilization, so do it as a
    # VPU multiply + sublane reduction over H.  Result is a lane-dense (1, TB)
    # row -> unmasked vector stores.
    v = jnp.sum(h * wv_ref[...], axis=0, keepdims=True)                     # (1, TB)
    out_ref[...] = v + bv_ref[...]


def value_forward(x, params, *, block_b=1024):
    """Fused Value forward pass.

    x: (B, state_dim) f32 (bf16 also accepted; the kernel casts anyway).
    Returns (B, 1) f32, matching the PyTorch module's output shape.
    """
    w1, b1, w2, b2, wv, bv = params
    B, S = x.shape

    # Batch tile on the lane axis: multiple of 128, capped so large batches give
    # at least 2 grid steps (keeps both v7x TCs busy).  The ragged last block is
    # masked by Pallas -- no wrapper-side padding.
    tb = min(_round_up(block_b, 128), _round_up(pl.cdiv(B, 2), 128))
    if B <= tb:
        tb = B  # single full-extent block (legal for any B, incl. B < 128)
    grid = (pl.cdiv(B, tb),)

    # One cheap wrapper transpose makes every vreg in the kernel lane-dense; the
    # kernel is compute/overhead-bound at these feature dims, so the extra HBM
    # pass over x is acceptable (and disappears if the producer emits x^T).
    xT = x.T  # (S, B)

    out = pl.pallas_call(
        value_kernel,
        out_shape=jax.ShapeDtypeStruct((1, B), jnp.float32),
        grid=grid,
        in_specs=[
            # x^T: pipelined (double-buffered) over the batch/lane axis.
            pl.BlockSpec((S, tb), lambda i: (0, i)),
            # Weights / biases: constant block index -> VMEM-resident across steps.
            pl.BlockSpec(w1.shape, lambda i: (0, 0)),
            pl.BlockSpec(b1.shape, lambda i: (0, 0)),
            pl.BlockSpec(w2.shape, lambda i: (0, 0)),
            pl.BlockSpec(b2.shape, lambda i: (0, 0)),
            pl.BlockSpec(wv.shape, lambda i: (0, 0)),
            pl.BlockSpec(bv.shape, lambda i: (0, 0)),
        ],
        # Lane-dense output slab; ragged last block store is masked by Pallas.
        out_specs=pl.BlockSpec((1, tb), lambda i: (0, i)),
        compiler_params=pltpu.CompilerParams(
            # Batch tiles are independent -> shard across TCs on v7x megacore.
            dimension_semantics=("parallel",),
        ),
    )(xT, w1, b1, w2, b2, wv, bv)

    # (1, B) row-major -> (B, 1); free reshape of a tiny array.
    return out.reshape(B, 1)


def init_params(key, state_dim, hidden_dim):
    """Deterministic init mimicking nn.Linear defaults (uniform +/-1/sqrt(fan_in)),
    with value_head.weight * 0.1 and value_head.bias * 0.0 as in the module.

    Weights are stored PyTorch-style (out_features, in_features) so the kernel's
    transposed layout computes W @ x^T directly.  MXU operands (w1, w2) are bf16;
    biases and the value-head column (VPU operands) stay f32.
    """
    ks = jax.random.split(key, 6)

    def linear_init(kw, kb, fan_in, fan_out):
        bound = 1.0 / math.sqrt(fan_in)
        w = jax.random.uniform(kw, (fan_out, fan_in), jnp.float32, -bound, bound)
        b = jax.random.uniform(kb, (fan_out, 1), jnp.float32, -bound, bound)
        return w, b

    w1, b1 = linear_init(ks[0], ks[1], state_dim, hidden_dim)
    w2, b2 = linear_init(ks[2], ks[3], hidden_dim, hidden_dim)
    wv, bv = linear_init(ks[4], ks[5], hidden_dim, 1)
    wv = (wv * 0.1).reshape(hidden_dim, 1)  # value_head.weight.data.mul_(0.1), as a column
    bv = (bv * 0.0).reshape(1, 1)           # value_head.bias.data.mul_(0.0)
    return (w1.astype(jnp.bfloat16), b1,
            w2.astype(jnp.bfloat16), b2,
            wv, bv)


def value_forward_ref(x, params):
    """Pure-JAX reference with the SAME bf16-matmul / f32-tanh numerics as the kernel."""
    w1, b1, w2, b2, wv, bv = params
    h = jnp.tanh(jnp.dot(w1, x.T.astype(jnp.bfloat16),
                         preferred_element_type=jnp.float32) + b1)
    h = jnp.tanh(jnp.dot(w2, h.astype(jnp.bfloat16),
                         preferred_element_type=jnp.float32) + b2)
    v = jnp.sum(h * wv, axis=0, keepdims=True) + bv
    return v.reshape(-1, 1)


def value_forward_ref_f32(x, params):
    """Full-f32 reference matching the PyTorch module's numerics (loose-tolerance check)."""
    w1, b1, w2, b2, wv, bv = params
    h = jnp.tanh(x @ w1.astype(jnp.float32).T + b1.T)
    h = jnp.tanh(h @ w2.astype(jnp.float32).T + b2.T)
    return h @ wv + bv


if __name__ == "__main__":
    batch, state_dim, hidden_dim = 8, 32, 64

    key = jax.random.PRNGKey(0)
    kx, kp = jax.random.split(key)
    x = jax.random.normal(kx, (batch, state_dim), dtype=jnp.float32)
    params = init_params(kp, state_dim, hidden_dim)

    # Small-batch check (single full-extent block).
    value = jax.block_until_ready(value_forward(x, params))
    assert value.shape == (batch, 1)
    assert jnp.allclose(value, value_forward_ref(x, params), atol=1e-4, rtol=1e-4), \
        "mismatch vs bf16-matched reference (small batch)"
    assert jnp.allclose(value, value_forward_ref_f32(x, params), atol=3e-2, rtol=3e-2), \
        "mismatch vs f32 reference (small batch)"

    # Larger, non-tile-multiple batch: exercises the multi-step grid + ragged
    # last block (no wrapper padding) + megacore-friendly 2-step split.
    x_big = jax.random.normal(jax.random.PRNGKey(1), (1000, state_dim), dtype=jnp.float32)
    value_big = jax.block_until_ready(value_forward(x_big, params, block_b=1024))
    assert value_big.shape == (1000, 1)
    assert jnp.allclose(value_big, value_forward_ref(x_big, params), atol=1e-4, rtol=1e-4), \
        "mismatch vs bf16-matched reference (big batch)"
    assert jnp.allclose(value_big, value_forward_ref_f32(x_big, params), atol=3e-2, rtol=3e-2), \
        "mismatch vs f32 reference (big batch)"

    print("KERNEL_OK")
</pallas_src>

<mosaic_0001>
module attributes {stable_mosaic.version = 11 : i64} {
  func.func @value_kernel(%arg0: i32, %arg1: memref<32x8xf32, #tpu.memory_space<vmem>>, %arg2: memref<64x32xbf16, #tpu.memory_space<vmem>>, %arg3: memref<64x1xf32, #tpu.memory_space<vmem>>, %arg4: memref<64x64xbf16, #tpu.memory_space<vmem>>, %arg5: memref<64x1xf32, #tpu.memory_space<vmem>>, %arg6: memref<64x1xf32, #tpu.memory_space<vmem>>, %arg7: memref<1x1xf32, #tpu.memory_space<vmem>>, %arg8: memref<1x8xf32, #tpu.memory_space<vmem>>) attributes {dimension_semantics = [#tpu.dimension_semantics<parallel>], iteration_bounds = array<i64: 1>, scalar_prefetch = 0 : i64, scratch_operands = 0 : i64, tpu.core_type = #tpu.core_type<tc>, window_params = [{transform_indices = @transform_0, window_bounds = array<i64: 32, 8>}, {pipeline_mode = #tpu.pipeline_mode<synchronous>, transform_indices = @transform_1, window_bounds = array<i64: 64, 32>}, {pipeline_mode = #tpu.pipeline_mode<synchronous>, transform_indices = @transform_2, window_bounds = array<i64: 64, 1>}, {pipeline_mode = #tpu.pipeline_mode<synchronous>, transform_indices = @transform_3, window_bounds = array<i64: 64, 64>}, {pipeline_mode = #tpu.pipeline_mode<synchronous>, transform_indices = @transform_4, window_bounds = array<i64: 64, 1>}, {pipeline_mode = #tpu.pipeline_mode<synchronous>, transform_indices = @transform_5, window_bounds = array<i64: 64, 1>}, {pipeline_mode = #tpu.pipeline_mode<synchronous>, transform_indices = @transform_6, window_bounds = array<i64: 1, 1>}, {transform_indices = @transform_7, window_bounds = array<i64: 1, 8>}]} {
    %c0 = arith.constant 0 : index
    %c0_0 = arith.constant 0 : index
    %0 = vector.load %arg1[%c0, %c0_0] : memref<32x8xf32, #tpu.memory_space<vmem>>, vector<32x8xf32>
    %1 = arith.truncf %0 : vector<32x8xf32> to vector<32x8xbf16>
    %c0_1 = arith.constant 0 : index
    %c0_2 = arith.constant 0 : index
    %2 = vector.load %arg2[%c0_1, %c0_2] : memref<64x32xbf16, #tpu.memory_space<vmem>>, vector<64x32xbf16>
    %cst = arith.constant dense<0.000000e+00> : vector<64x8xf32>
    %3 = tpu.matmul %2, %1, %cst {dimension_numbers = #tpu.dot_dimension_numbers<[1], [0], [0], [1], [0, 0, 1, 1], [], []>} : vector<64x32xbf16>, vector<32x8xbf16>, vector<64x8xf32> -> vector<64x8xf32>
    %c0_3 = arith.constant 0 : index
    %c0_4 = arith.constant 0 : index
    %4 = vector.load %arg3[%c0_3, %c0_4] : memref<64x1xf32, #tpu.memory_space<vmem>>, vector<64x1xf32>
    %5 = vector.broadcast %4 : vector<64x1xf32> to vector<64x8xf32>
    %6 = arith.addf %3, %5 : vector<64x8xf32>
    %7 = math.tanh %6 : vector<64x8xf32>
    %c0_5 = arith.constant 0 : index
    %c0_6 = arith.constant 0 : index
    %8 = vector.load %arg4[%c0_5, %c0_6] : memref<64x64xbf16, #tpu.memory_space<vmem>>, vector<64x64xbf16>
    %9 = arith.truncf %7 : vector<64x8xf32> to vector<64x8xbf16>
    %cst_7 = arith.constant dense<0.000000e+00> : vector<64x8xf32>
    %10 = tpu.matmul %8, %9, %cst_7 {dimension_numbers = #tpu.dot_dimension_numbers<[1], [0], [0], [1], [0, 0, 1, 1], [], []>} : vector<64x64xbf16>, vector<64x8xbf16>, vector<64x8xf32> -> vector<64x8xf32>
    %c0_8 = arith.constant 0 : index
    %c0_9 = arith.constant 0 : index
    %11 = vector.load %arg5[%c0_8, %c0_9] : memref<64x1xf32, #tpu.memory_space<vmem>>, vector<64x1xf32>
    %12 = vector.broadcast %11 : vector<64x1xf32> to vector<64x8xf32>
    %13 = arith.addf %10, %12 : vector<64x8xf32>
    %14 = math.tanh %13 : vector<64x8xf32>
    %c0_10 = arith.constant 0 : index
    %c0_11 = arith.constant 0 : index
    %15 = vector.load %arg6[%c0_10, %c0_11] : memref<64x1xf32, #tpu.memory_space<vmem>>, vector<64x1xf32>
    %16 = vector.broadcast %15 : vector<64x1xf32> to vector<64x8xf32>
    %17 = arith.mulf %14, %16 : vector<64x8xf32>
    %cst_12 = arith.constant dense<0.000000e+00> : vector<8xf32>
    %18 = vector.multi_reduction <add>, %17, %cst_12 [0] : vector<64x8xf32> to vector<8xf32>
    %19 = vector.shape_cast %18 : vector<8xf32> to vector<1x8xf32>
    %c0_13 = arith.constant 0 : index
    %c0_14 = arith.constant 0 : index
    %20 = vector.load %arg7[%c0_13, %c0_14] : memref<1x1xf32, #tpu.memory_space<vmem>>, vector<1x1xf32>
    %21 = vector.broadcast %20 : vector<1x1xf32> to vector<1x8xf32>
    %22 = arith.addf %19, %21 : vector<1x8xf32>
    %c0_15 = arith.constant 0 : index
    %c0_16 = arith.constant 0 : index
    %23 = vector.load %arg8[%c0_15, %c0_16] : memref<1x8xf32, #tpu.memory_space<vmem>>, vector<1x8xf32>
    tpu.vector_store %arg8[%c0_15, %c0_16], %22 {strides = array<i32>} : memref<1x8xf32, #tpu.memory_space<vmem>>, vector<1x8xf32>,
    return
  }
  func.func @transform_0(%arg0: i32) -> (i32, i32) {
    %c0_i32 = arith.constant 0 : i32
    %c0_i32_0 = arith.constant 0 : i32
    return %c0_i32, %arg0 : i32, i32
  }
  func.func @transform_1(%arg0: i32) -> (i32, i32) {
    %c0_i32 = arith.constant 0 : i32
    %c0_i32_0 = arith.constant 0 : i32
    %c0_i32_1 = arith.constant 0 : i32
    return %c0_i32, %c0_i32_0 : i32, i32
  }
  func.func @transform_2(%arg0: i32) -> (i32, i32) {
    %c0_i32 = arith.constant 0 : i32
    %c0_i32_0 = arith.constant 0 : i32
    %c0_i32_1 = arith.constant 0 : i32
    return %c0_i32, %c0_i32_0 : i32, i32
  }
  func.func @transform_3(%arg0: i32) -> (i32, i32) {
    %c0_i32 = arith.constant 0 : i32
    %c0_i32_0 = arith.constant 0 : i32
    %c0_i32_1 = arith.constant 0 : i32
    return %c0_i32, %c0_i32_0 : i32, i32
  }
  func.func @transform_4(%arg0: i32) -> (i32, i32) {
    %c0_i32 = arith.constant 0 : i32
    %c0_i32_0 = arith.constant 0 : i32
    %c0_i32_1 = arith.constant 0 : i32
    return %c0_i32, %c0_i32_0 : i32, i32
  }
  func.func @transform_5(%arg0: i32) -> (i32, i32) {
    %c0_i32 = arith.constant 0 : i32
    %c0_i32_0 = arith.constant 0 : i32
    %c0_i32_1 = arith.constant 0 : i32
    return %c0_i32, %c0_i32_0 : i32, i32
  }
  func.func @transform_6(%arg0: i32) -> (i32, i32) {
    %c0_i32 = arith.constant 0 : i32
    %c0_i32_0 = arith.constant 0 : i32
    %c0_i32_1 = arith.constant 0 : i32
    return %c0_i32, %c0_i32_0 : i32, i32
  }
  func.func @transform_7(%arg0: i32) -> (i32, i32) {
    %c0_i32 = arith.constant 0 : i32
    %c0_i32_0 = arith.constant 0 : i32
    return %c0_i32, %arg0 : i32, i32
  }
}

</mosaic_0001>

<llo_original>
// kernel: tpu_custom_call.1
$region0: #{tpu_custom_call.1}
  #allocation0 [shape = 'u32[]', space=smem, size = 0x4, offset = 0x4, fixed_abs, tag = 'smem constant byte address 0x4 - core index']
  #allocation1 [shape = 'u32[144,128]{1,0:T(1,128)}', space=vmem, size = 0x12000, scoped, tag = 'internal scratch']
  #allocation2 [shape = 'f32[1,1]{1,0:T(1,128)S(1)}', space=vmem, size = 0x200, scoped, tag = 'scoped memory for tpu_custom_call.1']
  %s0 = inlined_call_operand.vmem [shape: f32[32,8], index: 0, kind: input, shape index: {}]
  %s1 = inlined_call_operand.vmem [shape: bf16[64,32], index: 1, kind: input, shape index: {}]
  %s2 = inlined_call_operand.vmem [shape: f32[64,1], index: 2, kind: input, shape index: {}]
  %s3 = inlined_call_operand.vmem [shape: bf16[64,64], index: 3, kind: input, shape index: {}]
  %s4 = inlined_call_operand.vmem [shape: f32[64,1], index: 4, kind: input, shape index: {}]
  %s5 = inlined_call_operand.vmem [shape: f32[64,1], index: 5, kind: input, shape index: {}]
  %s6 = inlined_call_operand.<no memory space> [shape: f32[1,1], index: 6, kind: input, shape index: {}]
  %s7 = inlined_call_operand.hbm [shape: f32[1,8], index: 7, kind: output, shape index: {}]
  %s8 = sld [smem:[#allocation0]]
  $region38: #{tpu_custom_call.1} parent=0
    _
  %s10 = ssub.s32 1, %s8
  %s11 = scalar_select 0, %s10, %s8
  %v12 = vstv %s6
  %13 = vst [vmem:[#allocation2] sm:$0x1] %v12
  $region1: #{tpu_custom_call.1} parent=0
    #allocation3 [shape = 'u8[512]{0}', space=vmem, size = 0x400, scoped, tag = 'output window, operand 0, single buffered']
    #allocation4 [shape = 's32[1]{0}', space=sflag, size = 0x4, scoped, tag = 'scoped memory for tpu_custom_call.1']
    %14 = vsyncpa [#allocation4], 0
    // Predicated region
    $region2: #{tpu_custom_call.1} parent=1 // pred_check
      _
    $region3: #{tpu_custom_call.1} parent=1 // pred_check_branch
      %16 = sbr.rel (0) target = $region5
    $region4: #{tpu_custom_call.1} parent=1 // pred_region
      _
    $region5: #{tpu_custom_call.1} parent=1 // pred_fallthru
      _
    // Predicated region
    $region6: #{tpu_custom_call.1} parent=1 // pred_check
      _
    $region7: #{tpu_custom_call.1} parent=1 // pred_check_branch
      %18 = sbr.rel (0) target = $region9
    $region8: #{tpu_custom_call.1} parent=1 // pred_region
      _
    $region9: #{tpu_custom_call.1} parent=1 // pred_fallthru
      _
    // Predicated region
    $region10: #{tpu_custom_call.1} parent=1 // pred_check
      _
    $region11: #{tpu_custom_call.1} parent=1 // pred_check_branch
      %20 = sbr.rel (0) target = $region13
    $region12: #{tpu_custom_call.1} parent=1 // pred_region
      _
    $region13: #{tpu_custom_call.1} parent=1 // pred_fallthru
      _
    // Predicated region
    $region14: #{tpu_custom_call.1} parent=1 // pred_check
      _
    $region15: #{tpu_custom_call.1} parent=1 // pred_check_branch
      %22 = sbr.rel (0) target = $region17
    $region16: #{tpu_custom_call.1} parent=1 // pred_region
      _
    $region17: #{tpu_custom_call.1} parent=1 // pred_fallthru
      _
    // Predicated region
    $region18: #{tpu_custom_call.1} parent=1 // pred_check
      _
    $region19: #{tpu_custom_call.1} parent=1 // pred_check_branch
      %24 = sbr.rel (0) target = $region21
    $region20: #{tpu_custom_call.1} parent=1 // pred_region
      _
    $region21: #{tpu_custom_call.1} parent=1 // pred_fallthru
      _
    // Predicated region
    $region22: #{tpu_custom_call.1} parent=1 // pred_check
      _
    $region23: #{tpu_custom_call.1} parent=1 // pred_check_branch
      %26 = sbr.rel (0) target = $region25
    $region24: #{tpu_custom_call.1} parent=1 // pred_region
      _
    $region25: #{tpu_custom_call.1} parent=1 // pred_fallthru
      _
    // Predicated region
    $region26: #{tpu_custom_call.1} parent=1 // pred_check
      _
    $region27: #{tpu_custom_call.1} parent=1 // pred_check_branch
      %28 = sbr.rel (0) target = $region29
    $region28: #{tpu_custom_call.1} parent=1 // pred_region
      _
    $region29: #{tpu_custom_call.1} parent=1 // pred_fallthru
      _
    %v30 = vld [vmem:[%s0] sm:$0xff]
    %v31 = vld [vmem:[%s0 + $0x8] sm:$0xff]
    %v32 = vld [vmem:[%s0 + $0x10] sm:$0xff]
    %v33 = vld [vmem:[%s0 + $0x18] sm:$0xff]
    %v34 = vpack.c.bf16 %v31, %v30
    %v35 = vpack.c.bf16 %v33, %v32
    %v36 = vld [vmem:[%s1] sm:$0xf]
    %v37 = vld [vmem:[%s1 + $0x4] sm:$0xf]
    %v38 = vld [vmem:[%s1 + $0x8] sm:$0xf]
    %v39 = vld [vmem:[%s1 + $0xc] sm:$0xf]
    %v40 = vld [vmem:[%s1 + $0x10] sm:$0xf]
    %v41 = vld [vmem:[%s1 + $0x14] sm:$0xf]
    %v42 = vld [vmem:[%s1 + $0x18] sm:$0xf]
    %v43 = vld [vmem:[%s1 + $0x1c] sm:$0xf]
    %v44 = vld [vmem:[%s2] sm:$0xff]
    %v45 = vld [vmem:[%s2 + $0x8] sm:$0xff]
    %v46 = vld [vmem:[%s2 + $0x10] sm:$0xff]
    %v47 = vld [vmem:[%s2 + $0x18] sm:$0xff]
    %v48 = vld [vmem:[%s2 + $0x20] sm:$0xff]
    %v49 = vld [vmem:[%s2 + $0x28] sm:$0xff]
    %v50 = vld [vmem:[%s2 + $0x30] sm:$0xff]
    %v51 = vld [vmem:[%s2 + $0x38] sm:$0xff]
    %53 = vset.pattern.permute.xlu0 0
    %54 = vperm.xlu0 %53, %v44
    %v55 = vpop.permute.xlu0 %54
    %58 = vset.pattern.permute.xlu0 0
    %59 = vperm.xlu0 %58, %v45
    %v60 = vpop.permute.xlu0 %59
    %63 = vset.pattern.permute.xlu0 0
    %64 = vperm.xlu0 %63, %v46
    %v65 = vpop.permute.xlu0 %64
    %68 = vset.pattern.permute.xlu0 0
    %69 = vperm.xlu0 %68, %v47
    %v70 = vpop.permute.xlu0 %69
    %73 = vset.pattern.permute.xlu0 0
    %74 = vperm.xlu0 %73, %v48
    %v75 = vpop.permute.xlu0 %74
    %78 = vset.pattern.permute.xlu0 0
    %79 = vperm.xlu0 %78, %v49
    %v80 = vpop.permute.xlu0 %79
    %83 = vset.pattern.permute.xlu0 0
    %84 = vperm.xlu0 %83, %v50
    %v85 = vpop.permute.xlu0 %84
    %88 = vset.pattern.permute.xlu0 0
    %89 = vperm.xlu0 %88, %v51
    %v90 = vpop.permute.xlu0 %89
    %v100 = vunpack.c.l.b16 %v36
    %v101 = vunpack.c.l.b16 %v37
    %v102 = vunpack.c.l.b16 %v38
    %v103 = vunpack.c.l.b16 %v39
    %v104 = vunpack.c.l.b16 %v40
    %v105 = vunpack.c.l.b16 %v41
    %v106 = vunpack.c.l.b16 %v42
    %v107 = vunpack.c.l.b16 %v43
    %v108 = vpack.c.b16 %v101, %v100
    %v109 = vpack.c.b16 %v103, %v102
    %v110 = vpack.c.b16 %v105, %v104
    %v111 = vpack.c.b16 %v107, %v106
    %vm112 = vcmask 261120
    %v114 = vsel %vm112, %v108, 0
    %v117 = vsel %vm112, %v109, 0
    %v120 = vsel %vm112, %v110, 0
    %v123 = vsel %vm112, %v111, 0
    %125 = vmatprep.subr.bf16.mxu0 0
    %126 = vmatpush1.bf16.msra.mxu0 %v34
    %127 = vmatprep.subr.bf16.mxu0 0
    %128 = vmatpush1.bf16.msra.mxu0 %v35
    %129 = vmatprep.subr.bf16.mxu0 0
    %130 = vmatpush1.bf16.msra.mxu0 0
    %131 = vmatprep.subr.bf16.mxu0 0
    %132 = vmatpush1.bf16.msra.mxu0 0
    %133 = vmatprep.subr.bf16.mxu0 0
    %134 = vmatpush1.bf16.msra.mxu0 0
    %135 = vmatprep.subr.bf16.mxu0 0
    %136 = vmatpush1.bf16.msra.mxu0 0
    %137 = vmatprep.subr.bf16.mxu0 0
    %138 = vmatpush1.bf16.msra.mxu0 0
    %139 = vmatprep.subr.bf16.mxu0 0
    %140 = vmatpush1.bf16.msra.mxu0 0
    %141 = vmatprep.subr.bf16.mxu0 0
    %142 = vmatpush1.bf16.msra.mxu0 0
    %143 = vmatprep.subr.bf16.mxu0 0
    %144 = vmatpush1.bf16.msra.mxu0 0
    %145 = vmatprep.subr.bf16.mxu0 0
    %146 = vmatpush1.bf16.msra.mxu0 0
    %147 = vmatprep.subr.bf16.mxu0 0
    %148 = vmatpush1.bf16.msra.mxu0 0
    %149 = vmatprep.subr.bf16.mxu0 0
    %150 = vmatpush1.bf16.msra.mxu0 0
    %151 = vmatprep.subr.bf16.mxu0 0
    %152 = vmatpush1.bf16.msra.mxu0 0
    %153 = vmatprep.subr.bf16.mxu0 0
    %154 = vmatpush1.bf16.msra.mxu0 0
    %155 = vmatprep.subr.bf16.mxu0 0
    %156 = vmatpush1.bf16.msra.mxu0 0
    %157 = vmatprep.mubr.bf16.mxu0 0
    %158 = vmatmul.mubr.bf16.gmra.mrb[0].mxu0 %v114
    %v159 = vpop.f32.mrb[0].mxu0
    %v160 = vadd.f32 %v55, %v159
    %v161 = vpop.f32.mrb[0].mxu0
    %v162 = vpop.f32.mrb[0].mxu0
    %v163 = vadd.f32 %v60, %v162
    %v164 = vpop.f32.mrb[0].mxu0
    %165 = vmatprep.mubr.bf16.mxu0 0
    %166 = vmatmul.mubr.bf16.gmra.mrb[0].mxu0 %v117
    %v167 = vpop.f32.mrb[0].mxu0
    %v168 = vadd.f32 %v65, %v167
    %v169 = vpop.f32.mrb[0].mxu0
    %v170 = vpop.f32.mrb[0].mxu0
    %v171 = vadd.f32 %v70, %v170
    %v172 = vpop.f32.mrb[0].mxu0
    %173 = vmatprep.mubr.bf16.mxu0 0
    %174 = vmatmul.mubr.bf16.gmra.mrb[0].mxu0 %v120
    %v175 = vpop.f32.mrb[0].mxu0
    %v176 = vadd.f32 %v75, %v175
    %v177 = vpop.f32.mrb[0].mxu0
    %v178 = vpop.f32.mrb[0].mxu0
    %v179 = vadd.f32 %v80, %v178
    %v180 = vpop.f32.mrb[0].mxu0
    %181 = vmatprep.mubr.bf16.mxu0 0
    %182 = vmatmul.mubr.bf16.gmra.mrb[0].mxu0 %v123
    %v183 = vpop.f32.mrb[0].mxu0
    %v184 = vadd.f32 %v85, %v183
    %v185 = vpop.f32.mrb[0].mxu0
    %v186 = vpop.f32.mrb[0].mxu0
    %v187 = vadd.f32 %v90, %v186
    %v188 = vpop.f32.mrb[0].mxu0
    %189 = vdwg.mxu0
    %v190 = vtanh.pop %v160
    %v191 = vtanh.pop %v163
    %v192 = vtanh.pop %v168
    %v193 = vtanh.pop %v171
    %v194 = vtanh.pop %v176
    %v195 = vtanh.pop %v179
    %v196 = vtanh.pop %v184
    %v197 = vtanh.pop %v187
    %v198 = vld [vmem:[%s3] sm:$0xf]
    %v199 = vld [vmem:[%s3 + $0x4] sm:$0xf]
    %v200 = vld [vmem:[%s3 + $0x8] sm:$0xf]
    %v201 = vld [vmem:[%s3 + $0xc] sm:$0xf]
    %v202 = vld [vmem:[%s3 + $0x10] sm:$0xf]
    %v203 = vld [vmem:[%s3 + $0x14] sm:$0xf]
    %v204 = vld [vmem:[%s3 + $0x18] sm:$0xf]
    %v205 = vld [vmem:[%s3 + $0x1c] sm:$0xf]
    %v206 = vpack.c.bf16 %v191, %v190
    %v207 = vpack.c.bf16 %v193, %v192
    %v208 = vpack.c.bf16 %v195, %v194
    %v209 = vpack.c.bf16 %v197, %v196
    %v210 = vld [vmem:[%s4] sm:$0xff]
    %v211 = vld [vmem:[%s4 + $0x8] sm:$0xff]
    %v212 = vld [vmem:[%s4 + $0x10] sm:$0xff]
    %v213 = vld [vmem:[%s4 + $0x18] sm:$0xff]
    %v214 = vld [vmem:[%s4 + $0x20] sm:$0xff]
    %v215 = vld [vmem:[%s4 + $0x28] sm:$0xff]
    %v216 = vld [vmem:[%s4 + $0x30] sm:$0xff]
    %v217 = vld [vmem:[%s4 + $0x38] sm:$0xff]
    %219 = vset.pattern.permute.xlu0 0
    %220 = vperm.xlu0 %219, %v210
    %v221 = vpop.permute.xlu0 %220
    %224 = vset.pattern.permute.xlu0 0
    %225 = vperm.xlu0 %224, %v211
    %v226 = vpop.permute.xlu0 %225
    %229 = vset.pattern.permute.xlu0 0
    %230 = vperm.xlu0 %229, %v212
    %v231 = vpop.permute.xlu0 %230
    %234 = vset.pattern.permute.xlu0 0
    %235 = vperm.xlu0 %234, %v213
    %v236 = vpop.permute.xlu0 %235
    %239 = vset.pattern.permute.xlu0 0
    %240 = vperm.xlu0 %239, %v214
    %v241 = vpop.permute.xlu0 %240
    %244 = vset.pattern.permute.xlu0 0
    %245 = vperm.xlu0 %244, %v215
    %v246 = vpop.permute.xlu0 %245
    %249 = vset.pattern.permute.xlu0 0
    %250 = vperm.xlu0 %249, %v216
    %v251 = vpop.permute.xlu0 %250
    %254 = vset.pattern.permute.xlu0 0
    %255 = vperm.xlu0 %254, %v217
    %v256 = vpop.permute.xlu0 %255
    %v266 = vunpack.c.l.b16 %v198
    %v267 = vunpack.c.l.b16 %v199
    %v268 = vunpack.c.l.b16 %v200
    %v269 = vunpack.c.l.b16 %v201
    %v270 = vunpack.c.l.b16 %v202
    %v271 = vunpack.c.l.b16 %v203
    %v272 = vunpack.c.l.b16 %v204
    %v273 = vunpack.c.l.b16 %v205
    %v274 = vpack.c.b16 %v267, %v266
    %v275 = vpack.c.b16 %v269, %v268
    %v276 = vpack.c.b16 %v271, %v270
    %v277 = vpack.c.b16 %v273, %v272
    %vm278 = vcmask 523264
    %v280 = vsel %vm278, %v274, 0
    %v283 = vsel %vm278, %v275, 0
    %v286 = vsel %vm278, %v276, 0
    %v289 = vsel %vm278, %v277, 0
    %291 = vmatprep.subr.bf16.mxu0 0
    %292 = vmatpush1.bf16.msra.mxu0 %v206
    %293 = vmatprep.subr.bf16.mxu0 0
    %294 = vmatpush1.bf16.msra.mxu0 %v207
    %295 = vmatprep.subr.bf16.mxu0 0
    %296 = vmatpush1.bf16.msra.mxu0 %v208
    %297 = vmatprep.subr.bf16.mxu0 0
    %298 = vmatpush1.bf16.msra.mxu0 %v209
    %299 = vmatprep.subr.bf16.mxu0 0
    %300 = vmatpush1.bf16.msra.mxu0 0
    %301 = vmatprep.subr.bf16.mxu0 0
    %302 = vmatpush1.bf16.msra.mxu0 0
    %303 = vmatprep.subr.bf16.mxu0 0
    %304 = vmatpush1.bf16.msra.mxu0 0
    %305 = vmatprep.subr.bf16.mxu0 0
    %306 = vmatpush1.bf16.msra.mxu0 0
    %307 = vmatprep.subr.bf16.mxu0 0
    %308 = vmatpush1.bf16.msra.mxu0 0
    %309 = vmatprep.subr.bf16.mxu0 0
    %310 = vmatpush1.bf16.msra.mxu0 0
    %311 = vmatprep.subr.bf16.mxu0 0
    %312 = vmatpush1.bf16.msra.mxu0 0
    %313 = vmatprep.subr.bf16.mxu0 0
    %314 = vmatpush1.bf16.msra.mxu0 0
    %315 = vmatprep.subr.bf16.mxu0 0
    %316 = vmatpush1.bf16.msra.mxu0 0
    %317 = vmatprep.subr.bf16.mxu0 0
    %318 = vmatpush1.bf16.msra.mxu0 0
    %319 = vmatprep.subr.bf16.mxu0 0
    %320 = vmatpush1.bf16.msra.mxu0 0
    %321 = vmatprep.subr.bf16.mxu0 0
    %322 = vmatpush1.bf16.msra.mxu0 0
    %323 = vmatprep.mubr.bf16.mxu0 0
    %324 = vmatmul.mubr.bf16.gmra.mrb[0].mxu0 %v280
    %v325 = vpop.f32.mrb[0].mxu0
    %v326 = vadd.f32 %v221, %v325
    %v327 = vpop.f32.mrb[0].mxu0
    %v328 = vpop.f32.mrb[0].mxu0
    %v329 = vadd.f32 %v226, %v328
    %v330 = vpop.f32.mrb[0].mxu0
    %331 = vmatprep.mubr.bf16.mxu0 0
    %332 = vmatmul.mubr.bf16.gmra.mrb[0].mxu0 %v283
    %v333 = vpop.f32.mrb[0].mxu0
    %v334 = vadd.f32 %v231, %v333
    %v335 = vpop.f32.mrb[0].mxu0
    %v336 = vpop.f32.mrb[0].mxu0
    %v337 = vadd.f32 %v236, %v336
    %v338 = vpop.f32.mrb[0].mxu0
    %339 = vmatprep.mubr.bf16.mxu0 0
    %340 = vmatmul.mubr.bf16.gmra.mrb[0].mxu0 %v286
    %v341 = vpop.f32.mrb[0].mxu0
    %v342 = vadd.f32 %v241, %v341
    %v343 = vpop.f32.mrb[0].mxu0
    %v344 = vpop.f32.mrb[0].mxu0
    %v345 = vadd.f32 %v246, %v344
    %v346 = vpop.f32.mrb[0].mxu0
    %347 = vmatprep.mubr.bf16.mxu0 0
    %348 = vmatmul.mubr.bf16.gmra.mrb[0].mxu0 %v289
    %v349 = vpop.f32.mrb[0].mxu0
    %v350 = vadd.f32 %v251, %v349
    %v351 = vpop.f32.mrb[0].mxu0
    %v352 = vpop.f32.mrb[0].mxu0
    %v353 = vadd.f32 %v256, %v352
    %v354 = vpop.f32.mrb[0].mxu0
    %355 = vdwg.mxu0
    %v356 = vtanh.pop %v326
    %v357 = vtanh.pop %v329
    %v358 = vtanh.pop %v334
    %v359 = vtanh.pop %v337
    %v360 = vtanh.pop %v342
    %v361 = vtanh.pop %v345
    %v362 = vtanh.pop %v350
    %v363 = vtanh.pop %v353
    %v364 = vld [vmem:[%s5] sm:$0xff]
    %v365 = vld [vmem:[%s5 + $0x8] sm:$0xff]
    %v366 = vld [vmem:[%s5 + $0x10] sm:$0xff]
    %v367 = vld [vmem:[%s5 + $0x18] sm:$0xff]
    %v368 = vld [vmem:[%s5 + $0x20] sm:$0xff]
    %v369 = vld [vmem:[%s5 + $0x28] sm:$0xff]
    %v370 = vld [vmem:[%s5 + $0x30] sm:$0xff]
    %v371 = vld [vmem:[%s5 + $0x38] sm:$0xff]
    %373 = vset.pattern.permute.xlu0 0
    %374 = vperm.xlu0 %373, %v364
    %v375 = vpop.permute.xlu0 %374
    %378 = vset.pattern.permute.xlu0 0
    %379 = vperm.xlu0 %378, %v365
    %v380 = vpop.permute.xlu0 %379
    %383 = vset.pattern.permute.xlu0 0
    %384 = vperm.xlu0 %383, %v366
    %v385 = vpop.permute.xlu0 %384
    %388 = vset.pattern.permute.xlu0 0
    %389 = vperm.xlu0 %388, %v367
    %v390 = vpop.permute.xlu0 %389
    %393 = vset.pattern.permute.xlu0 0
    %394 = vperm.xlu0 %393, %v368
    %v395 = vpop.permute.xlu0 %394
    %398 = vset.pattern.permute.xlu0 0
    %399 = vperm.xlu0 %398, %v369
    %v400 = vpop.permute.xlu0 %399
    %403 = vset.pattern.permute.xlu0 0
    %404 = vperm.xlu0 %403, %v370
    %v405 = vpop.permute.xlu0 %404
    %408 = vset.pattern.permute.xlu0 0
    %409 = vperm.xlu0 %408, %v371
    %v410 = vpop.permute.xlu0 %409
    %v412 = vmul.f32 %v356, %v375
    %v413 = vmul.f32 %v357, %v380
    %v414 = vmul.f32 %v358, %v385
    %v415 = vmul.f32 %v359, %v390
    %v416 = vmul.f32 %v360, %v395
    %v417 = vmul.f32 %v361, %v400
    %v418 = vmul.f32 %v362, %v405
    %v419 = vmul.f32 %v363, %v410
    %vm420 = vcmask 64512
    %v421 = vsel %vm420, %v412, 0.0
    %v422 = vsel %vm420, %v413, 0.0
    %v423 = vadd.f32 %v421, %v422
    %v424 = vsel %vm420, %v414, 0.0
    %v425 = vadd.f32 %v423, %v424
    %v426 = vsel %vm420, %v415, 0.0
    %v427 = vadd.f32 %v425, %v426
    %v428 = vsel %vm420, %v416, 0.0
    %v429 = vadd.f32 %v427, %v428
    %v430 = vsel %vm420, %v417, 0.0
    %v431 = vadd.f32 %v429, %v430
    %v432 = vsel %vm420, %v418, 0.0
    %v433 = vadd.f32 %v431, %v432
    %v434 = vsel %vm420, %v419, 0.0
    %v435 = vadd.f32 %v433, %v434
    %v436 = vrot.slane %v435, 4
    %v437 = vadd.f32 %v435, %v436
    %v438 = vrot.slane %v437, 2
    %v439 = vadd.f32 %v437, %v438
    %v440 = vrot.slane %v439, 1
    %v441 = vadd.f32 %v439, %v440
    %v442 = vld [vmem:[#allocation2] sm:$0x1]
    %444 = vset.pattern.permute.xlu0 0
    %445 = vperm.xlu0 %444, %v442
    %v446 = vpop.permute.xlu0 %445
    %v448 = vlaneseq
    %v449 = vshrl.u32 %v448, 7
    %v450 = vsub.s32 0, %v449
    %v451 = vrot.slane %v446, %v450
    %v452 = vadd.f32 %v441, %v451
    %vm453 = vcmask 57344
    %454 = vst.msk [vmem:[#allocation3] sm:$0x1] %vm453, %v452
    // Predicated region
    $region30: #{tpu_custom_call.1} parent=1 // pred_check
      _
    $region31: #{tpu_custom_call.1} parent=1 // pred_check_branch
      %456 = sbr.rel (0) target = $region33
    $region32: #{tpu_custom_call.1} parent=1 // pred_region
      %s458 = ssub.s32 16, 16
      %459 = vsyncadd [#allocation4], %s458
      %s461 = sshll.u32 [#allocation3], 4
      %s462 = int_to_ptr.vmem [resolvable:$true] %s461
      %464 = dma.vmem_to_hbm [thread:$0]  %s462, 16, %s7, [#allocation4]
    $region33: #{tpu_custom_call.1} parent=1 // pred_fallthru
      _
    // Predicated region
    $region34: #{tpu_custom_call.1} parent=1 // pred_check
      _
    $region35: #{tpu_custom_call.1} parent=1 // pred_check_branch
      %466 = sbr.rel (0) target = $region37
    $region36: #{tpu_custom_call.1} parent=1 // pred_region
      %467 = dma.done [#allocation4], 16
    $region37: #{tpu_custom_call.1} parent=1 // pred_fallthru
      _
    %468 = vsyncpa [#allocation4], 1

</llo_original>
